<compile_context>
chip_gen: v7x
topology: tpu7x:2x2x1
jax: 0.10.0
libtpu: 0.0.40
codegen_flags: <defaults>
</compile_context>

<pallas_src>
import functools

import jax
import jax.numpy as jnp
from jax import lax
from jax.experimental import pallas as pl
from jax.experimental.pallas import tpu as pltpu

BN_EPS = 1e-5

# Flipped to False (once) if this jax/libtpu rejects pl.Buffered(1) specs.
_SINGLE_BUFFER_OK = True


def _round_up(v, m):
    return (v + m - 1) // m * m


def _pad2(a, rows, cols, value=0.0):
    pr, pc = rows - a.shape[0], cols - a.shape[1]
    if pr == 0 and pc == 0:
        return a
    return jnp.pad(a, ((0, pr), (0, pc)), constant_values=value)


def _default_tiling():
    """Generation-aware (block_n, vmem_limit_bytes)."""
    vmem_cap = None
    try:
        info = pltpu.get_tpu_info()
        vmem_cap = getattr(info, "vmem_capacity_bytes", None)
    except Exception:
        vmem_cap = None
    if vmem_cap is None:
        vmem_cap = 64 * 1024 * 1024  # conservative (v7x-sized)
    if vmem_cap >= 96 * 1024 * 1024:
        # v5e / v6e: 128 MiB physical VMEM -> bigger batch tiles, higher limit.
        return 512, 100 * 1024 * 1024
    # v7x: 64 MiB physical VMEM.
    return 256, 48 * 1024 * 1024


def _resident_spec(block_shape, index_map, single_buffer):
    """BlockSpec for a grid-invariant operand; single-buffered when supported."""
    buffered = getattr(pl, "Buffered", None)
    if single_buffer and buffered is not None:
        try:
            return pl.BlockSpec(block_shape, index_map, pipeline_mode=buffered(1))
        except TypeError:
            pass  # older API without pipeline_mode
    return pl.BlockSpec(block_shape, index_map)


# ---------------- pass 1: fc1 + per-tile BN statistics ----------------
def _fc1_stats_kernel(x_ref, w1_ref, h_ref, sum_ref, sumsq_ref):
    # fc1 without bias: a per-feature constant cancels exactly under BatchNorm.
    h = jnp.dot(x_ref[...], w1_ref[...], preferred_element_type=jnp.float32)
    # Column partials from the f32 accumulator BEFORE narrowing h for storage,
    # so pass-2 normalization matches the statistics exactly.  Padded batch
    # rows are exactly zero (zero-padded x, no bias) and contribute nothing.
    sum_ref[0, :, :] = jnp.sum(h, axis=0, keepdims=True)
    sumsq_ref[0, :, :] = jnp.sum(h * h, axis=0, keepdims=True)
    h_ref[...] = h.astype(h_ref.dtype)


# ---------------- pass 2: fused BN scale/shift + ReLU + fc2 ----------------
def _bn_relu_fc2_kernel(h_ref, scale_ref, shift_ref, w2_ref, b2_ref, o_ref):
    # h (narrow) * f32 scale promotes to f32; BN/ReLU vector math stays f32.
    a = jnp.maximum(h_ref[...] * scale_ref[...] + shift_ref[...], 0.0)
    o_ref[...] = (
        jnp.dot(a.astype(w2_ref.dtype), w2_ref[...],
                preferred_element_type=jnp.float32) + b2_ref[...]
    ).astype(o_ref.dtype)


def mlp_forward(x, w1, b1, gamma, beta, w2, b2, *, block_n=None,
                compute_dtype=jnp.bfloat16, out_dtype=None,
                single_buffer_resident=True):
    """Training-mode forward pass of the BYOL MLP head."""
    del b1  # fc1 bias is mathematically cancelled by BatchNorm centering.
    n, d_in = x.shape
    h_dim = w1.shape[1]
    d_out = w2.shape[1]
    out_dtype = out_dtype or x.dtype
    compute_dtype = jnp.dtype(compute_dtype)
    csize = compute_dtype.itemsize
    osize = jnp.dtype(out_dtype).itemsize

    default_block_n, vmem_limit = _default_tiling()
    if block_n is None:
        block_n = default_block_n

    # ---- batch tiling: sublane-aligned tiles, >= 2 tiles when splittable ----
    n8 = _round_up(n, 8)
    block_n = _round_up(min(block_n, n8), 8)
    if n8 > 8:  # make the "parallel" axis actually split across v7x's 2 TCs
        block_n = min(block_n, _round_up(pl.cdiv(n8, 2), 8))
    block_n = max(block_n, 8)
    n_p = _round_up(n, block_n)
    num_tiles = n_p // block_n

    # ---- feature dims -> multiples of 128 lanes ----
    d_in_p = _round_up(d_in, 128)
    h_p = _round_up(h_dim, 128)
    d_out_p = _round_up(d_out, 128)

    # bf16 MXU path by default (f32 accumulation inside the kernels).
    x_p = _pad2(x, n_p, d_in_p).astype(compute_dtype)
    w1_p = _pad2(w1, d_in_p, h_p).astype(compute_dtype)
    w2_p = _pad2(w2, h_p, d_out_p).astype(compute_dtype)
    gamma_p = _pad2(gamma.reshape(1, -1).astype(jnp.float32), 1, h_p, 1.0)
    beta_p = _pad2(beta.reshape(1, -1).astype(jnp.float32), 1, h_p)
    b2_p = _pad2(b2.reshape(1, -1).astype(jnp.float32), 1, d_out_p)

    cparams = pltpu.CompilerParams(
        dimension_semantics=("parallel",), vmem_limit_bytes=vmem_limit)

    # ---- pass 1: fc1 + per-tile stats ----
    cost1 = pl.CostEstimate(
        flops=2 * n_p * d_in_p * h_p + 3 * n_p * h_p,
        transcendentals=0,
        bytes_accessed=(n_p * d_in_p * csize + d_in_p * h_p * csize
                        + n_p * h_p * csize + 2 * num_tiles * h_p * 4))
    h, sums, sumsqs = pl.pallas_call(
        _fc1_stats_kernel,
        grid=(num_tiles,),
        in_specs=[
            pl.BlockSpec((block_n, d_in_p), lambda i: (i, 0)),
            _resident_spec((d_in_p, h_p), lambda i: (0, 0), single_buffer_resident),
        ],
        out_specs=[
            pl.BlockSpec((block_n, h_p), lambda i: (i, 0)),
            pl.BlockSpec((1, 1, h_p), lambda i: (i, 0, 0)),
            pl.BlockSpec((1, 1, h_p), lambda i: (i, 0, 0)),
        ],
        out_shape=[
            jax.ShapeDtypeStruct((n_p, h_p), compute_dtype),
            jax.ShapeDtypeStruct((num_tiles, 1, h_p), jnp.float32),
            jax.ShapeDtypeStruct((num_tiles, 1, h_p), jnp.float32),
        ],
        compiler_params=cparams,
        cost_estimate=cost1,
    )(x_p, w1_p)

    # ---- tiny glue: global batch stats -> fused BN scale / shift (1, H) ----
    col_sum = jnp.sum(sums[:, 0, :], axis=0)
    col_sumsq = jnp.sum(sumsqs[:, 0, :], axis=0)
    inv_n = 1.0 / float(n)                       # true batch size (pads are 0)
    mean = col_sum * inv_n
    # TODO(synk): E[h^2]-mean^2 can cancel catastrophically if |mean| >> std;
    # switch to a compensated/centered variance if activations can be large.
    var = jnp.maximum(col_sumsq * inv_n - mean * mean, 0.0)  # biased variance
    inv_std = lax.rsqrt(var + BN_EPS)
    scale = (gamma_p * inv_std).reshape(1, h_p)  # (1, h_p) f32
    shift = (beta_p - mean * scale).reshape(1, h_p)

    # ---- pass 2: BN affine + ReLU + fc2 ----
    cost2 = pl.CostEstimate(
        flops=2 * n_p * h_p * d_out_p + 5 * n_p * h_p,
        transcendentals=0,
        bytes_accessed=(n_p * h_p * csize + h_p * d_out_p * csize
                        + (2 * h_p + d_out_p) * 4 + n_p * d_out_p * osize))
    out_p = pl.pallas_call(
        _bn_relu_fc2_kernel,
        grid=(num_tiles,),
        in_specs=[
            pl.BlockSpec((block_n, h_p), lambda i: (i, 0)),
            _resident_spec((1, h_p), lambda i: (0, 0), single_buffer_resident),
            _resident_spec((1, h_p), lambda i: (0, 0), single_buffer_resident),
            _resident_spec((h_p, d_out_p), lambda i: (0, 0), single_buffer_resident),
            _resident_spec((1, d_out_p), lambda i: (0, 0), single_buffer_resident),
        ],
        out_specs=pl.BlockSpec((block_n, d_out_p), lambda i: (i, 0)),
        out_shape=jax.ShapeDtypeStruct((n_p, d_out_p), out_dtype),
        compiler_params=cparams,
        cost_estimate=cost2,
    )(h, scale, shift, w2_p, b2_p)

    return out_p[:n, :d_out]


def init_params(key, in_features, hidden_features, out_features):
    k1, k2, k3, k4 = jax.random.split(key, 4)
    bound1 = 1.0 / (in_features ** 0.5)
    bound2 = 1.0 / (hidden_features ** 0.5)
    w1 = jax.random.uniform(k1, (in_features, hidden_features), jnp.float32, -bound1, bound1)
    b1 = jax.random.uniform(k2, (1, hidden_features), jnp.float32, -bound1, bound1)
    w2 = jax.random.uniform(k3, (hidden_features, out_features), jnp.float32, -bound2, bound2)
    b2 = jax.random.uniform(k4, (1, out_features), jnp.float32, -bound2, bound2)
    gamma = jnp.ones((1, hidden_features), jnp.float32)   # BatchNorm1d weight
    beta = jnp.zeros((1, hidden_features), jnp.float32)   # BatchNorm1d bias
    return w1, b1, gamma, beta, w2, b2


def reference_forward(x, w1, b1, gamma, beta, w2, b2):
    h = x @ w1 + b1
    mean = jnp.mean(h, axis=0, keepdims=True)
    var = jnp.mean((h - mean) ** 2, axis=0, keepdims=True)  # biased, training mode
    h = (h - mean) / jnp.sqrt(var + BN_EPS)
    h = h * gamma + beta
    h = jnp.maximum(h, 0.0)
    return h @ w2 + b2


if __name__ == "__main__":
    key = jax.random.PRNGKey(0)
    kx1, kp1, kx2, kp2 = jax.random.split(key, 4)

    def run(x, params, **kw):
        """jit + run, falling back if pl.Buffered(1) specs are unsupported."""
        global _SINGLE_BUFFER_OK
        if _SINGLE_BUFFER_OK:
            try:
                out = jax.jit(functools.partial(mlp_forward, **kw))(x, *params)
                return jax.block_until_ready(out)
            except Exception:
                _SINGLE_BUFFER_OK = False
        out = jax.jit(functools.partial(
            mlp_forward, single_buffer_resident=False, **kw))(x, *params)
        return jax.block_until_ready(out)

    # Test 1: toy BYOL-head shapes, default bf16 MXU path (single batch tile).
    batch, d_in, d_hidden, d_out = 8, 16, 32, 8
    x = jax.random.normal(kx1, (batch, d_in), jnp.float32)
    params = init_params(kp1, d_in, d_hidden, d_out)
    out = run(x, params)
    ref = reference_forward(x, *params)
    assert out.shape == (batch, d_out)
    assert jnp.allclose(out, ref, atol=1e-1, rtol=1e-1), float(jnp.max(jnp.abs(out - ref)))

    # Test 2: f32 compute path, multi-tile grid with ragged last tile
    # (exact check of cross-tile BN statistics + zero-padded rows).
    batch2, d_in2, d_h2, d_out2 = 20, 24, 48, 12
    x2 = jax.random.normal(kx2, (batch2, d_in2), jnp.float32)
    params2 = init_params(kp2, d_in2, d_h2, d_out2)
    out2 = run(x2, params2, block_n=8, compute_dtype=jnp.float32)
    ref2 = reference_forward(x2, *params2)
    assert out2.shape == (batch2, d_out2)
    assert jnp.allclose(out2, ref2, atol=1e-4, rtol=1e-4), float(jnp.max(jnp.abs(out2 - ref2)))

    # Test 3: default bf16 path on the multi-tile ragged batch (auto >= 2 tiles).
    out3 = run(x2, params2)
    assert out3.shape == (batch2, d_out2)
    assert jnp.allclose(out3, ref2, atol=1e-1, rtol=1e-1), float(jnp.max(jnp.abs(out3 - ref2)))

    print("KERNEL_OK")
</pallas_src>

<mosaic_0001>
module attributes {stable_mosaic.version = 11 : i64} {
  func.func @_fc1_stats_kernel(%arg0: i32, %arg1: memref<8x128xbf16, #tpu.memory_space<vmem>>, %arg2: memref<128x128xbf16, #tpu.memory_space<vmem>>, %arg3: memref<8x128xbf16, #tpu.memory_space<vmem>>, %arg4: memref<1x1x128xf32, #tpu.memory_space<vmem>>, %arg5: memref<1x1x128xf32, #tpu.memory_space<vmem>>) attributes {dimension_semantics = [#tpu.dimension_semantics<parallel>], iteration_bounds = array<i64: 1>, scalar_prefetch = 0 : i64, scratch_operands = 0 : i64, tpu.core_type = #tpu.core_type<tc>, window_params = [{transform_indices = @transform_0, window_bounds = array<i64: 8, 128>}, {pipeline_mode = #tpu.pipeline_mode<synchronous>, transform_indices = @transform_1, window_bounds = array<i64: 128, 128>}, {transform_indices = @transform_2, window_bounds = array<i64: 8, 128>}, {transform_indices = @transform_3, window_bounds = array<i64: 1, 1, 128>}, {transform_indices = @transform_4, window_bounds = array<i64: 1, 1, 128>}]} {
    %c0 = arith.constant 0 : index
    %c0_0 = arith.constant 0 : index
    %0 = vector.load %arg1[%c0, %c0_0] : memref<8x128xbf16, #tpu.memory_space<vmem>>, vector<8x128xbf16>
    %c0_1 = arith.constant 0 : index
    %c0_2 = arith.constant 0 : index
    %1 = vector.load %arg2[%c0_1, %c0_2] : memref<128x128xbf16, #tpu.memory_space<vmem>>, vector<128x128xbf16>
    %cst = arith.constant dense<0.000000e+00> : vector<8x128xf32>
    %2 = tpu.matmul %0, %1, %cst {dimension_numbers = #tpu.dot_dimension_numbers<[1], [0], [0], [1], [0, 0, 1, 1], [], []>} : vector<8x128xbf16>, vector<128x128xbf16>, vector<8x128xf32> -> vector<8x128xf32>
    %cst_3 = arith.constant dense<0.000000e+00> : vector<128xf32>
    %3 = vector.multi_reduction <add>, %2, %cst_3 [0] : vector<8x128xf32> to vector<128xf32>
    %4 = vector.shape_cast %3 : vector<128xf32> to vector<1x128xf32>
    %c0_4 = arith.constant 0 : index
    %c0_5 = arith.constant 0 : index
    %c0_6 = arith.constant 0 : index
    %5 = vector.load %arg4[%c0_4, %c0_5, %c0_6] : memref<1x1x128xf32, #tpu.memory_space<vmem>>, vector<1x1x128xf32>
    %6 = vector.shape_cast %5 : vector<1x1x128xf32> to vector<1x128xf32>
    %7 = vector.shape_cast %4 : vector<1x128xf32> to vector<1x1x128xf32>
    tpu.vector_store %arg4[%c0_4, %c0_5, %c0_6], %7 {strides = array<i32>} : memref<1x1x128xf32, #tpu.memory_space<vmem>>, vector<1x1x128xf32>,
    %8 = arith.mulf %2, %2 : vector<8x128xf32>
    %cst_7 = arith.constant dense<0.000000e+00> : vector<128xf32>
    %9 = vector.multi_reduction <add>, %8, %cst_7 [0] : vector<8x128xf32> to vector<128xf32>
    %10 = vector.shape_cast %9 : vector<128xf32> to vector<1x128xf32>
    %c0_8 = arith.constant 0 : index
    %c0_9 = arith.constant 0 : index
    %c0_10 = arith.constant 0 : index
    %11 = vector.load %arg5[%c0_8, %c0_9, %c0_10] : memref<1x1x128xf32, #tpu.memory_space<vmem>>, vector<1x1x128xf32>
    %12 = vector.shape_cast %11 : vector<1x1x128xf32> to vector<1x128xf32>
    %13 = vector.shape_cast %10 : vector<1x128xf32> to vector<1x1x128xf32>
    tpu.vector_store %arg5[%c0_8, %c0_9, %c0_10], %13 {strides = array<i32>} : memref<1x1x128xf32, #tpu.memory_space<vmem>>, vector<1x1x128xf32>,
    %14 = arith.truncf %2 : vector<8x128xf32> to vector<8x128xbf16>
    %c0_11 = arith.constant 0 : index
    %c0_12 = arith.constant 0 : index
    %15 = vector.load %arg3[%c0_11, %c0_12] : memref<8x128xbf16, #tpu.memory_space<vmem>>, vector<8x128xbf16>
    tpu.vector_store %arg3[%c0_11, %c0_12], %14 {strides = array<i32>} : memref<8x128xbf16, #tpu.memory_space<vmem>>, vector<8x128xbf16>,
    return
  }
  func.func @transform_0(%arg0: i32) -> (i32, i32) {
    %c0_i32 = arith.constant 0 : i32
    %c0_i32_0 = arith.constant 0 : i32
    return %arg0, %c0_i32 : i32, i32
  }
  func.func @transform_1(%arg0: i32) -> (i32, i32) {
    %c0_i32 = arith.constant 0 : i32
    %c0_i32_0 = arith.constant 0 : i32
    %c0_i32_1 = arith.constant 0 : i32
    return %c0_i32, %c0_i32_0 : i32, i32
  }
  func.func @transform_2(%arg0: i32) -> (i32, i32) {
    %c0_i32 = arith.constant 0 : i32
    %c0_i32_0 = arith.constant 0 : i32
    return %arg0, %c0_i32 : i32, i32
  }
  func.func @transform_3(%arg0: i32) -> (i32, i32, i32) {
    %c0_i32 = arith.constant 0 : i32
    %c0_i32_0 = arith.constant 0 : i32
    %c0_i32_1 = arith.constant 0 : i32
    return %arg0, %c0_i32, %c0_i32_0 : i32, i32, i32
  }
  func.func @transform_4(%arg0: i32) -> (i32, i32, i32) {
    %c0_i32 = arith.constant 0 : i32
    %c0_i32_0 = arith.constant 0 : i32
    %c0_i32_1 = arith.constant 0 : i32
    return %arg0, %c0_i32, %c0_i32_0 : i32, i32, i32
  }
}

module attributes {stable_mosaic.version = 11 : i64} {
  func.func @_bn_relu_fc2_kernel(%arg0: i32, %arg1: memref<8x128xbf16, #tpu.memory_space<vmem>>, %arg2: memref<1x128xf32, #tpu.memory_space<vmem>>, %arg3: memref<1x128xf32, #tpu.memory_space<vmem>>, %arg4: memref<128x128xbf16, #tpu.memory_space<vmem>>, %arg5: memref<1x128xf32, #tpu.memory_space<vmem>>, %arg6: memref<8x128xf32, #tpu.memory_space<vmem>>) attributes {dimension_semantics = [#tpu.dimension_semantics<parallel>], iteration_bounds = array<i64: 1>, scalar_prefetch = 0 : i64, scratch_operands = 0 : i64, tpu.core_type = #tpu.core_type<tc>, window_params = [{transform_indices = @transform_0, window_bounds = array<i64: 8, 128>}, {pipeline_mode = #tpu.pipeline_mode<synchronous>, transform_indices = @transform_1, window_bounds = array<i64: 1, 128>}, {pipeline_mode = #tpu.pipeline_mode<synchronous>, transform_indices = @transform_2, window_bounds = array<i64: 1, 128>}, {pipeline_mode = #tpu.pipeline_mode<synchronous>, transform_indices = @transform_3, window_bounds = array<i64: 128, 128>}, {pipeline_mode = #tpu.pipeline_mode<synchronous>, transform_indices = @transform_4, window_bounds = array<i64: 1, 128>}, {transform_indices = @transform_5, window_bounds = array<i64: 8, 128>}]} {
    %c0 = arith.constant 0 : index
    %c0_0 = arith.constant 0 : index
    %0 = vector.load %arg1[%c0, %c0_0] : memref<8x128xbf16, #tpu.memory_space<vmem>>, vector<8x128xbf16>
    %c0_1 = arith.constant 0 : index
    %c0_2 = arith.constant 0 : index
    %1 = vector.load %arg2[%c0_1, %c0_2] : memref<1x128xf32, #tpu.memory_space<vmem>>, vector<1x128xf32>
    %2 = arith.extf %0 : vector<8x128xbf16> to vector<8x128xf32>
    %3 = vector.broadcast %1 : vector<1x128xf32> to vector<8x128xf32>
    %4 = arith.mulf %2, %3 : vector<8x128xf32>
    %c0_3 = arith.constant 0 : index
    %c0_4 = arith.constant 0 : index
    %5 = vector.load %arg3[%c0_3, %c0_4] : memref<1x128xf32, #tpu.memory_space<vmem>>, vector<1x128xf32>
    %6 = vector.broadcast %5 : vector<1x128xf32> to vector<8x128xf32>
    %7 = arith.addf %4, %6 : vector<8x128xf32>
    %cst = arith.constant 0.000000e+00 : f32
    %8 = vector.broadcast %cst : f32 to vector<8x128xf32>
    %9 = arith.maximumf %7, %8 : vector<8x128xf32>
    %10 = arith.truncf %9 : vector<8x128xf32> to vector<8x128xbf16>
    %c0_5 = arith.constant 0 : index
    %c0_6 = arith.constant 0 : index
    %11 = vector.load %arg4[%c0_5, %c0_6] : memref<128x128xbf16, #tpu.memory_space<vmem>>, vector<128x128xbf16>
    %cst_7 = arith.constant dense<0.000000e+00> : vector<8x128xf32>
    %12 = tpu.matmul %10, %11, %cst_7 {dimension_numbers = #tpu.dot_dimension_numbers<[1], [0], [0], [1], [0, 0, 1, 1], [], []>} : vector<8x128xbf16>, vector<128x128xbf16>, vector<8x128xf32> -> vector<8x128xf32>
    %c0_8 = arith.constant 0 : index
    %c0_9 = arith.constant 0 : index
    %13 = vector.load %arg5[%c0_8, %c0_9] : memref<1x128xf32, #tpu.memory_space<vmem>>, vector<1x128xf32>
    %14 = vector.broadcast %13 : vector<1x128xf32> to vector<8x128xf32>
    %15 = arith.addf %12, %14 : vector<8x128xf32>
    %c0_10 = arith.constant 0 : index
    %c0_11 = arith.constant 0 : index
    %16 = vector.load %arg6[%c0_10, %c0_11] : memref<8x128xf32, #tpu.memory_space<vmem>>, vector<8x128xf32>
    tpu.vector_store %arg6[%c0_10, %c0_11], %15 {strides = array<i32>} : memref<8x128xf32, #tpu.memory_space<vmem>>, vector<8x128xf32>,
    return
  }
  func.func @transform_0(%arg0: i32) -> (i32, i32) {
    %c0_i32 = arith.constant 0 : i32
    %c0_i32_0 = arith.constant 0 : i32
    return %arg0, %c0_i32 : i32, i32
  }
  func.func @transform_1(%arg0: i32) -> (i32, i32) {
    %c0_i32 = arith.constant 0 : i32
    %c0_i32_0 = arith.constant 0 : i32
    %c0_i32_1 = arith.constant 0 : i32
    return %c0_i32, %c0_i32_0 : i32, i32
  }
  func.func @transform_2(%arg0: i32) -> (i32, i32) {
    %c0_i32 = arith.constant 0 : i32
    %c0_i32_0 = arith.constant 0 : i32
    %c0_i32_1 = arith.constant 0 : i32
    return %c0_i32, %c0_i32_0 : i32, i32
  }
  func.func @transform_3(%arg0: i32) -> (i32, i32) {
    %c0_i32 = arith.constant 0 : i32
    %c0_i32_0 = arith.constant 0 : i32
    %c0_i32_1 = arith.constant 0 : i32
    return %c0_i32, %c0_i32_0 : i32, i32
  }
  func.func @transform_4(%arg0: i32) -> (i32, i32) {
    %c0_i32 = arith.constant 0 : i32
    %c0_i32_0 = arith.constant 0 : i32
    %c0_i32_1 = arith.constant 0 : i32
    return %c0_i32, %c0_i32_0 : i32, i32
  }
  func.func @transform_5(%arg0: i32) -> (i32, i32) {
    %c0_i32 = arith.constant 0 : i32
    %c0_i32_0 = arith.constant 0 : i32
    return %arg0, %c0_i32 : i32, i32
  }
}

module attributes {stable_mosaic.version = 11 : i64} {
  func.func @_fc1_stats_kernel(%arg0: i32, %arg1: memref<8x128xbf16, #tpu.memory_space<vmem>>, %arg2: memref<128x128xbf16, #tpu.memory_space<vmem>>, %arg3: memref<8x128xbf16, #tpu.memory_space<vmem>>, %arg4: memref<1x1x128xf32, #tpu.memory_space<vmem>>, %arg5: memref<1x1x128xf32, #tpu.memory_space<vmem>>) attributes {dimension_semantics = [#tpu.dimension_semantics<parallel>], iteration_bounds = array<i64: 1>, scalar_prefetch = 0 : i64, scratch_operands = 0 : i64, tpu.core_type = #tpu.core_type<tc>, window_params = [{transform_indices = @transform_0, window_bounds = array<i64: 8, 128>}, {pipeline_mode = #tpu.pipeline_mode<synchronous>, transform_indices = @transform_1, window_bounds = array<i64: 128, 128>}, {transform_indices = @transform_2, window_bounds = array<i64: 8, 128>}, {transform_indices = @transform_3, window_bounds = array<i64: 1, 1, 128>}, {transform_indices = @transform_4, window_bounds = array<i64: 1, 1, 128>}]} {
    %c0 = arith.constant 0 : index
    %c0_0 = arith.constant 0 : index
    %0 = vector.load %arg1[%c0, %c0_0] : memref<8x128xbf16, #tpu.memory_space<vmem>>, vector<8x128xbf16>
    %c0_1 = arith.constant 0 : index
    %c0_2 = arith.constant 0 : index
    %1 = vector.load %arg2[%c0_1, %c0_2] : memref<128x128xbf16, #tpu.memory_space<vmem>>, vector<128x128xbf16>
    %cst = arith.constant dense<0.000000e+00> : vector<8x128xf32>
    %2 = tpu.matmul %0, %1, %cst {dimension_numbers = #tpu.dot_dimension_numbers<[1], [0], [0], [1], [0, 0, 1, 1], [], []>} : vector<8x128xbf16>, vector<128x128xbf16>, vector<8x128xf32> -> vector<8x128xf32>
    %cst_3 = arith.constant dense<0.000000e+00> : vector<128xf32>
    %3 = vector.multi_reduction <add>, %2, %cst_3 [0] : vector<8x128xf32> to vector<128xf32>
    %4 = vector.shape_cast %3 : vector<128xf32> to vector<1x128xf32>
    %c0_4 = arith.constant 0 : index
    %c0_5 = arith.constant 0 : index
    %c0_6 = arith.constant 0 : index
    %5 = vector.load %arg4[%c0_4, %c0_5, %c0_6] : memref<1x1x128xf32, #tpu.memory_space<vmem>>, vector<1x1x128xf32>
    %6 = vector.shape_cast %5 : vector<1x1x128xf32> to vector<1x128xf32>
    %7 = vector.shape_cast %4 : vector<1x128xf32> to vector<1x1x128xf32>
    tpu.vector_store %arg4[%c0_4, %c0_5, %c0_6], %7 {strides = array<i32>} : memref<1x1x128xf32, #tpu.memory_space<vmem>>, vector<1x1x128xf32>,
    %8 = arith.mulf %2, %2 : vector<8x128xf32>
    %cst_7 = arith.constant dense<0.000000e+00> : vector<128xf32>
    %9 = vector.multi_reduction <add>, %8, %cst_7 [0] : vector<8x128xf32> to vector<128xf32>
    %10 = vector.shape_cast %9 : vector<128xf32> to vector<1x128xf32>
    %c0_8 = arith.constant 0 : index
    %c0_9 = arith.constant 0 : index
    %c0_10 = arith.constant 0 : index
    %11 = vector.load %arg5[%c0_8, %c0_9, %c0_10] : memref<1x1x128xf32, #tpu.memory_space<vmem>>, vector<1x1x128xf32>
    %12 = vector.shape_cast %11 : vector<1x1x128xf32> to vector<1x128xf32>
    %13 = vector.shape_cast %10 : vector<1x128xf32> to vector<1x1x128xf32>
    tpu.vector_store %arg5[%c0_8, %c0_9, %c0_10], %13 {strides = array<i32>} : memref<1x1x128xf32, #tpu.memory_space<vmem>>, vector<1x1x128xf32>,
    %14 = arith.truncf %2 : vector<8x128xf32> to vector<8x128xbf16>
    %c0_11 = arith.constant 0 : index
    %c0_12 = arith.constant 0 : index
    %15 = vector.load %arg3[%c0_11, %c0_12] : memref<8x128xbf16, #tpu.memory_space<vmem>>, vector<8x128xbf16>
    tpu.vector_store %arg3[%c0_11, %c0_12], %14 {strides = array<i32>} : memref<8x128xbf16, #tpu.memory_space<vmem>>, vector<8x128xbf16>,
    return
  }
  func.func @transform_0(%arg0: i32) -> (i32, i32) {
    %c0_i32 = arith.constant 0 : i32
    %c0_i32_0 = arith.constant 0 : i32
    return %arg0, %c0_i32 : i32, i32
  }
  func.func @transform_1(%arg0: i32) -> (i32, i32) {
    %c0_i32 = arith.constant 0 : i32
    %c0_i32_0 = arith.constant 0 : i32
    %c0_i32_1 = arith.constant 0 : i32
    return %c0_i32, %c0_i32_0 : i32, i32
  }
  func.func @transform_2(%arg0: i32) -> (i32, i32) {
    %c0_i32 = arith.constant 0 : i32
    %c0_i32_0 = arith.constant 0 : i32
    return %arg0, %c0_i32 : i32, i32
  }
  func.func @transform_3(%arg0: i32) -> (i32, i32, i32) {
    %c0_i32 = arith.constant 0 : i32
    %c0_i32_0 = arith.constant 0 : i32
    %c0_i32_1 = arith.constant 0 : i32
    return %arg0, %c0_i32, %c0_i32_0 : i32, i32, i32
  }
  func.func @transform_4(%arg0: i32) -> (i32, i32, i32) {
    %c0_i32 = arith.constant 0 : i32
    %c0_i32_0 = arith.constant 0 : i32
    %c0_i32_1 = arith.constant 0 : i32
    return %arg0, %c0_i32, %c0_i32_0 : i32, i32, i32
  }
}

module attributes {stable_mosaic.version = 11 : i64} {
  func.func @_bn_relu_fc2_kernel(%arg0: i32, %arg1: memref<8x128xbf16, #tpu.memory_space<vmem>>, %arg2: memref<1x128xf32, #tpu.memory_space<vmem>>, %arg3: memref<1x128xf32, #tpu.memory_space<vmem>>, %arg4: memref<128x128xbf16, #tpu.memory_space<vmem>>, %arg5: memref<1x128xf32, #tpu.memory_space<vmem>>, %arg6: memref<8x128xf32, #tpu.memory_space<vmem>>) attributes {dimension_semantics = [#tpu.dimension_semantics<parallel>], iteration_bounds = array<i64: 1>, scalar_prefetch = 0 : i64, scratch_operands = 0 : i64, tpu.core_type = #tpu.core_type<tc>, window_params = [{transform_indices = @transform_0, window_bounds = array<i64: 8, 128>}, {pipeline_mode = #tpu.pipeline_mode<synchronous>, transform_indices = @transform_1, window_bounds = array<i64: 1, 128>}, {pipeline_mode = #tpu.pipeline_mode<synchronous>, transform_indices = @transform_2, window_bounds = array<i64: 1, 128>}, {pipeline_mode = #tpu.pipeline_mode<synchronous>, transform_indices = @transform_3, window_bounds = array<i64: 128, 128>}, {pipeline_mode = #tpu.pipeline_mode<synchronous>, transform_indices = @transform_4, window_bounds = array<i64: 1, 128>}, {transform_indices = @transform_5, window_bounds = array<i64: 8, 128>}]} {
    %c0 = arith.constant 0 : index
    %c0_0 = arith.constant 0 : index
    %0 = vector.load %arg1[%c0, %c0_0] : memref<8x128xbf16, #tpu.memory_space<vmem>>, vector<8x128xbf16>
    %c0_1 = arith.constant 0 : index
    %c0_2 = arith.constant 0 : index
    %1 = vector.load %arg2[%c0_1, %c0_2] : memref<1x128xf32, #tpu.memory_space<vmem>>, vector<1x128xf32>
    %2 = arith.extf %0 : vector<8x128xbf16> to vector<8x128xf32>
    %3 = vector.broadcast %1 : vector<1x128xf32> to vector<8x128xf32>
    %4 = arith.mulf %2, %3 : vector<8x128xf32>
    %c0_3 = arith.constant 0 : index
    %c0_4 = arith.constant 0 : index
    %5 = vector.load %arg3[%c0_3, %c0_4] : memref<1x128xf32, #tpu.memory_space<vmem>>, vector<1x128xf32>
    %6 = vector.broadcast %5 : vector<1x128xf32> to vector<8x128xf32>
    %7 = arith.addf %4, %6 : vector<8x128xf32>
    %cst = arith.constant 0.000000e+00 : f32
    %8 = vector.broadcast %cst : f32 to vector<8x128xf32>
    %9 = arith.maximumf %7, %8 : vector<8x128xf32>
    %10 = arith.truncf %9 : vector<8x128xf32> to vector<8x128xbf16>
    %c0_5 = arith.constant 0 : index
    %c0_6 = arith.constant 0 : index
    %11 = vector.load %arg4[%c0_5, %c0_6] : memref<128x128xbf16, #tpu.memory_space<vmem>>, vector<128x128xbf16>
    %cst_7 = arith.constant dense<0.000000e+00> : vector<8x128xf32>
    %12 = tpu.matmul %10, %11, %cst_7 {dimension_numbers = #tpu.dot_dimension_numbers<[1], [0], [0], [1], [0, 0, 1, 1], [], []>} : vector<8x128xbf16>, vector<128x128xbf16>, vector<8x128xf32> -> vector<8x128xf32>
    %c0_8 = arith.constant 0 : index
    %c0_9 = arith.constant 0 : index
    %13 = vector.load %arg5[%c0_8, %c0_9] : memref<1x128xf32, #tpu.memory_space<vmem>>, vector<1x128xf32>
    %14 = vector.broadcast %13 : vector<1x128xf32> to vector<8x128xf32>
    %15 = arith.addf %12, %14 : vector<8x128xf32>
    %c0_10 = arith.constant 0 : index
    %c0_11 = arith.constant 0 : index
    %16 = vector.load %arg6[%c0_10, %c0_11] : memref<8x128xf32, #tpu.memory_space<vmem>>, vector<8x128xf32>
    tpu.vector_store %arg6[%c0_10, %c0_11], %15 {strides = array<i32>} : memref<8x128xf32, #tpu.memory_space<vmem>>, vector<8x128xf32>,
    return
  }
  func.func @transform_0(%arg0: i32) -> (i32, i32) {
    %c0_i32 = arith.constant 0 : i32
    %c0_i32_0 = arith.constant 0 : i32
    return %arg0, %c0_i32 : i32, i32
  }
  func.func @transform_1(%arg0: i32) -> (i32, i32) {
    %c0_i32 = arith.constant 0 : i32
    %c0_i32_0 = arith.constant 0 : i32
    %c0_i32_1 = arith.constant 0 : i32
    return %c0_i32, %c0_i32_0 : i32, i32
  }
  func.func @transform_2(%arg0: i32) -> (i32, i32) {
    %c0_i32 = arith.constant 0 : i32
    %c0_i32_0 = arith.constant 0 : i32
    %c0_i32_1 = arith.constant 0 : i32
    return %c0_i32, %c0_i32_0 : i32, i32
  }
  func.func @transform_3(%arg0: i32) -> (i32, i32) {
    %c0_i32 = arith.constant 0 : i32
    %c0_i32_0 = arith.constant 0 : i32
    %c0_i32_1 = arith.constant 0 : i32
    return %c0_i32, %c0_i32_0 : i32, i32
  }
  func.func @transform_4(%arg0: i32) -> (i32, i32) {
    %c0_i32 = arith.constant 0 : i32
    %c0_i32_0 = arith.constant 0 : i32
    %c0_i32_1 = arith.constant 0 : i32
    return %c0_i32, %c0_i32_0 : i32, i32
  }
  func.func @transform_5(%arg0: i32) -> (i32, i32) {
    %c0_i32 = arith.constant 0 : i32
    %c0_i32_0 = arith.constant 0 : i32
    return %arg0, %c0_i32 : i32, i32
  }
}

</mosaic_0001>

<llo_original>
// kernel: mlp_forward.2
$region0: #{mlp_forward.2}
  #allocation0 [shape = 'u32[]', space=smem, size = 0x4, offset = 0x4, fixed_abs, tag = 'smem constant byte address 0x4 - core index']
  #allocation1 [shape = 'u32[144,128]{1,0:T(1,128)}', space=vmem, size = 0x12000, scoped, tag = 'internal scratch']
  %s0 = inlined_call_operand.vmem [shape: bf16[8,128], index: 0, kind: input, shape index: {}]
  %s1 = inlined_call_operand.vmem [shape: bf16[128,128], index: 1, kind: input, shape index: {}]
  %s2 = inlined_call_operand.vmem [shape: bf16[8,128], index: 2, kind: output, shape index: {0}]
  %s3 = inlined_call_operand.vmem [shape: f32[1,1,128], index: 3, kind: output, shape index: {1}]
  %s4 = inlined_call_operand.vmem [shape: f32[1,1,128], index: 4, kind: output, shape index: {2}]
  %5 = xla_tuple %s2, %s3, %s4
  %s6 = sld [smem:[#allocation0]]
  $region34: #{mlp_forward.2} parent=0
    _
  %s8 = ssub.s32 1, %s6
  %s9 = scalar_select 0, %s8, %s6
  // Predicated region
  $region2: #{mlp_forward.2} parent=0 // pred_check
    _
  $region3: #{mlp_forward.2} parent=0 // pred_check_branch
    %11 = sbr.rel (0) target = $region5
  $region4: #{mlp_forward.2} parent=0 // pred_region
    _
  $region5: #{mlp_forward.2} parent=0 // pred_fallthru
    _
  // Predicated region
  $region6: #{mlp_forward.2} parent=0 // pred_check
    _
  $region7: #{mlp_forward.2} parent=0 // pred_check_branch
    %13 = sbr.rel (0) target = $region9
  $region8: #{mlp_forward.2} parent=0 // pred_region
    _
  $region9: #{mlp_forward.2} parent=0 // pred_fallthru
    _
  %v15 = vld [vmem:[%s0] sm:$0xf]
  %v16 = vld [vmem:[%s1] sm:$0xf]
  %v17 = vld [vmem:[%s1 + $0x4] sm:$0xf]
  %v18 = vld [vmem:[%s1 + $0x8] sm:$0xf]
  %v19 = vld [vmem:[%s1 + $0xc] sm:$0xf]
  %v20 = vld [vmem:[%s1 + $0x10] sm:$0xf]
  %v21 = vld [vmem:[%s1 + $0x14] sm:$0xf]
  %v22 = vld [vmem:[%s1 + $0x18] sm:$0xf]
  %v23 = vld [vmem:[%s1 + $0x1c] sm:$0xf]
  %v24 = vld [vmem:[%s1 + $0x20] sm:$0xf]
  %v25 = vld [vmem:[%s1 + $0x24] sm:$0xf]
  %v26 = vld [vmem:[%s1 + $0x28] sm:$0xf]
  %v27 = vld [vmem:[%s1 + $0x2c] sm:$0xf]
  %v28 = vld [vmem:[%s1 + $0x30] sm:$0xf]
  %v29 = vld [vmem:[%s1 + $0x34] sm:$0xf]
  %v30 = vld [vmem:[%s1 + $0x38] sm:$0xf]
  %v31 = vld [vmem:[%s1 + $0x3c] sm:$0xf]
  %v48 = vunpack.c.l.b16 %v16
  %v49 = vunpack.c.l.b16 %v17
  %v50 = vunpack.c.l.b16 %v18
  %v51 = vunpack.c.l.b16 %v19
  %v52 = vunpack.c.l.b16 %v20
  %v53 = vunpack.c.l.b16 %v21
  %v54 = vunpack.c.l.b16 %v22
  %v55 = vunpack.c.l.b16 %v23
  %v56 = vunpack.c.l.b16 %v24
  %v57 = vunpack.c.l.b16 %v25
  %v58 = vunpack.c.l.b16 %v26
  %v59 = vunpack.c.l.b16 %v27
  %v60 = vunpack.c.l.b16 %v28
  %v61 = vunpack.c.l.b16 %v29
  %v62 = vunpack.c.l.b16 %v30
  %v63 = vunpack.c.l.b16 %v31
  %v64 = vpack.c.b16 %v49, %v48
  %v65 = vpack.c.b16 %v51, %v50
  %v66 = vpack.c.b16 %v53, %v52
  %v67 = vpack.c.b16 %v55, %v54
  %v68 = vpack.c.b16 %v57, %v56
  %v69 = vpack.c.b16 %v59, %v58
  %v70 = vpack.c.b16 %v61, %v60
  %v71 = vpack.c.b16 %v63, %v62
  %80 = vmatprep.subr.bf16.mxu0 0
  %81 = vmatpush1.bf16.msra.mxu0 %v64
  %82 = vmatprep.subr.bf16.mxu0 0
  %83 = vmatpush1.bf16.msra.mxu0 %v65
  %84 = vmatprep.subr.bf16.mxu0 0
  %85 = vmatpush1.bf16.msra.mxu0 %v66
  %86 = vmatprep.subr.bf16.mxu0 0
  %87 = vmatpush1.bf16.msra.mxu0 %v67
  %88 = vmatprep.subr.bf16.mxu0 0
  %89 = vmatpush1.bf16.msra.mxu0 %v68
  %90 = vmatprep.subr.bf16.mxu0 0
  %91 = vmatpush1.bf16.msra.mxu0 %v69
  %92 = vmatprep.subr.bf16.mxu0 0
  %93 = vmatpush1.bf16.msra.mxu0 %v70
  %94 = vmatprep.subr.bf16.mxu0 0
  %95 = vmatpush1.bf16.msra.mxu0 %v71
  %96 = vmatprep.subr.bf16.mxu0 0
  %97 = vmatpush1.bf16.msra.mxu0 0
  %98 = vmatprep.subr.bf16.mxu0 0
  %99 = vmatpush1.bf16.msra.mxu0 0
  %100 = vmatprep.subr.bf16.mxu0 0
  %101 = vmatpush1.bf16.msra.mxu0 0
  %102 = vmatprep.subr.bf16.mxu0 0
  %103 = vmatpush1.bf16.msra.mxu0 0
  %104 = vmatprep.subr.bf16.mxu0 0
  %105 = vmatpush1.bf16.msra.mxu0 0
  %106 = vmatprep.subr.bf16.mxu0 0
  %107 = vmatpush1.bf16.msra.mxu0 0
  %108 = vmatprep.subr.bf16.mxu0 0
  %109 = vmatpush1.bf16.msra.mxu0 0
  %110 = vmatprep.subr.bf16.mxu0 0
  %111 = vmatpush1.bf16.msra.mxu0 0
  %112 = vmatprep.mubr.bf16.mxu0 0
  %113 = vmatmul.mubr.bf16.gmra.mrb[0].mxu0 %v15
  %v114 = vpop.f32.mrb[0].mxu0
  %v115 = vadd.f32 0.0, %v114
  %v116 = vpop.f32.mrb[0].mxu0
  %v117 = vpop.f32.mrb[0].mxu0
  %v118 = vpop.f32.mrb[0].mxu0
  %119 = vdwg.mxu0
  %v120 = vrot.slane %v115, 4
  %v121 = vadd.f32 %v115, %v120
  %v122 = vrot.slane %v121, 2
  %v123 = vadd.f32 %v121, %v122
  %v124 = vrot.slane %v123, 1
  %v125 = vadd.f32 %v123, %v124
  %126 = vst [vmem:[%s3] sm:$0x1] %v125
  %v127 = vmul.f32 %v115, %v115
  %v128 = vrot.slane %v127, 4
  %v129 = vadd.f32 %v127, %v128
  %v130 = vrot.slane %v129, 2
  %v131 = vadd.f32 %v129, %v130
  %v132 = vrot.slane %v131, 1
  %v133 = vadd.f32 %v131, %v132
  %134 = vst [vmem:[%s4] sm:$0x1] %v133
  %v135 = vpack.c.bf16 %v115, %v115
  %136 = vst [vmem:[%s2] sm:$0xf] %v135
  // Predicated region
  $region10: #{mlp_forward.2} parent=0 // pred_check
    _
  $region11: #{mlp_forward.2} parent=0 // pred_check_branch
    %138 = sbr.rel (0) target = $region13
  $region12: #{mlp_forward.2} parent=0 // pred_region
    _
  $region13: #{mlp_forward.2} parent=0 // pred_fallthru
    _
  // Predicated region
  $region14: #{mlp_forward.2} parent=0 // pred_check
    _
  $region15: #{mlp_forward.2} parent=0 // pred_check_branch
    %140 = sbr.rel (0) target = $region17
  $region16: #{mlp_forward.2} parent=0 // pred_region
    _
  $region17: #{mlp_forward.2} parent=0 // pred_fallthru
    _
  // Predicated region
  $region18: #{mlp_forward.2} parent=0 // pred_check
    _
  $region19: #{mlp_forward.2} parent=0 // pred_check_branch
    %142 = sbr.rel (0) target = $region21
  $region20: #{mlp_forward.2} parent=0 // pred_region
    _
  $region21: #{mlp_forward.2} parent=0 // pred_fallthru
    _
  // Predicated region
  $region22: #{mlp_forward.2} parent=0 // pred_check
    _
  $region23: #{mlp_forward.2} parent=0 // pred_check_branch
    %144 = sbr.rel (0) target = $region25
  $region24: #{mlp_forward.2} parent=0 // pred_region
    _
  $region25: #{mlp_forward.2} parent=0 // pred_fallthru
    _
  // Predicated region
  $region26: #{mlp_forward.2} parent=0 // pred_check
    _
  $region27: #{mlp_forward.2} parent=0 // pred_check_branch
    %146 = sbr.rel (0) target = $region29
  $region28: #{mlp_forward.2} parent=0 // pred_region
    _
  $region29: #{mlp_forward.2} parent=0 // pred_fallthru
    _
  // Predicated region
  $region30: #{mlp_forward.2} parent=0 // pred_check
    _
  $region31: #{mlp_forward.2} parent=0 // pred_check_branch
    %148 = sbr.rel (0) target = $region33
  $region32: #{mlp_forward.2} parent=0 // pred_region
    _
  $region33: #{mlp_forward.2} parent=0 // pred_fallthru
    _

// kernel: mlp_forward.3
$region0: #{mlp_forward.3}
  #allocation0 [shape = 'u32[]', space=smem, size = 0x4, offset = 0x4, fixed_abs, tag = 'smem constant byte address 0x4 - core index']
  #allocation1 [shape = 'u32[144,128]{1,0:T(1,128)}', space=vmem, size = 0x12000, scoped, tag = 'internal scratch']
  %s0 = inlined_call_operand.vmem [shape: bf16[8,128], index: 0, kind: input, shape index: {}]
  %s1 = inlined_call_operand.vmem [shape: f32[1,128], index: 1, kind: input, shape index: {}]
  %s2 = inlined_call_operand.vmem [shape: f32[1,128], index: 2, kind: input, shape index: {}]
  %s3 = inlined_call_operand.vmem [shape: bf16[128,128], index: 3, kind: input, shape index: {}]
  %s4 = inlined_call_operand.vmem [shape: f32[1,128], index: 4, kind: input, shape index: {}]
  %s5 = inlined_call_operand.hbm [shape: f32[8,128], index: 5, kind: output, shape index: {}]
  %s6 = sld [smem:[#allocation0]]
  $region30: #{mlp_forward.3} parent=0
    _
  %s8 = ssub.s32 1, %s6
  %s9 = scalar_select 0, %s8, %s6
  $region1: #{mlp_forward.3} parent=0
    #allocation2 [shape = 'u8[4096]{0}', space=vmem, size = 0x1000, scoped, tag = 'output window, operand 0, single buffered']
    #allocation3 [shape = 's32[1]{0}', space=sflag, size = 0x4, scoped, tag = 'scoped memory for mlp_forward.3']
    %10 = vsyncpa [#allocation3], 0
    // Predicated region
    $region2: #{mlp_forward.3} parent=1 // pred_check
      _
    $region3: #{mlp_forward.3} parent=1 // pred_check_branch
      %12 = sbr.rel (0) target = $region5
    $region4: #{mlp_forward.3} parent=1 // pred_region
      _
    $region5: #{mlp_forward.3} parent=1 // pred_fallthru
      _
    // Predicated region
    $region6: #{mlp_forward.3} parent=1 // pred_check
      _
    $region7: #{mlp_forward.3} parent=1 // pred_check_branch
      %14 = sbr.rel (0) target = $region9
    $region8: #{mlp_forward.3} parent=1 // pred_region
      _
    $region9: #{mlp_forward.3} parent=1 // pred_fallthru
      _
    // Predicated region
    $region10: #{mlp_forward.3} parent=1 // pred_check
      _
    $region11: #{mlp_forward.3} parent=1 // pred_check_branch
      %16 = sbr.rel (0) target = $region13
    $region12: #{mlp_forward.3} parent=1 // pred_region
      _
    $region13: #{mlp_forward.3} parent=1 // pred_fallthru
      _
    // Predicated region
    $region14: #{mlp_forward.3} parent=1 // pred_check
      _
    $region15: #{mlp_forward.3} parent=1 // pred_check_branch
      %18 = sbr.rel (0) target = $region17
    $region16: #{mlp_forward.3} parent=1 // pred_region
      _
    $region17: #{mlp_forward.3} parent=1 // pred_fallthru
      _
    // Predicated region
    $region18: #{mlp_forward.3} parent=1 // pred_check
      _
    $region19: #{mlp_forward.3} parent=1 // pred_check_branch
      %20 = sbr.rel (0) target = $region21
    $region20: #{mlp_forward.3} parent=1 // pred_region
      _
    $region21: #{mlp_forward.3} parent=1 // pred_fallthru
      _
    %v22 = vld [vmem:[%s0] sm:$0xf]
    %v23 = vld [vmem:[%s1] sm:$0x1]
    %v24 = vunpack.c.l.bf16 %v22
    %v26 = vlaneseq
    %v27 = vshrl.u32 %v26, 7
    %v28 = vsub.s32 0, %v27
    %v29 = vrot.slane %v23, %v28
    %v31 = vmul.f32 %v24, %v29
    %v32 = vld [vmem:[%s2] sm:$0x1]
    %v34 = vlaneseq
    %v35 = vshrl.u32 %v34, 7
    %v36 = vsub.s32 0, %v35
    %v37 = vrot.slane %v32, %v36
    %v39 = vadd.f32 %v31, %v37
    %v40 = vmax.f32 %v39, 0.0
    %v41 = vpack.c.bf16 %v40, %v40
    %v42 = vld [vmem:[%s3] sm:$0xf]
    %v43 = vld [vmem:[%s3 + $0x4] sm:$0xf]
    %v44 = vld [vmem:[%s3 + $0x8] sm:$0xf]
    %v45 = vld [vmem:[%s3 + $0xc] sm:$0xf]
    %v46 = vld [vmem:[%s3 + $0x10] sm:$0xf]
    %v47 = vld [vmem:[%s3 + $0x14] sm:$0xf]
    %v48 = vld [vmem:[%s3 + $0x18] sm:$0xf]
    %v49 = vld [vmem:[%s3 + $0x1c] sm:$0xf]
    %v50 = vld [vmem:[%s3 + $0x20] sm:$0xf]
    %v51 = vld [vmem:[%s3 + $0x24] sm:$0xf]
    %v52 = vld [vmem:[%s3 + $0x28] sm:$0xf]
    %v53 = vld [vmem:[%s3 + $0x2c] sm:$0xf]
    %v54 = vld [vmem:[%s3 + $0x30] sm:$0xf]
    %v55 = vld [vmem:[%s3 + $0x34] sm:$0xf]
    %v56 = vld [vmem:[%s3 + $0x38] sm:$0xf]
    %v57 = vld [vmem:[%s3 + $0x3c] sm:$0xf]
    %v58 = vld [vmem:[%s4] sm:$0x1]
    %v60 = vlaneseq
    %v61 = vshrl.u32 %v60, 7
    %v62 = vsub.s32 0, %v61
    %v63 = vrot.slane %v58, %v62
    %v81 = vunpack.c.l.b16 %v42
    %v82 = vunpack.c.l.b16 %v43
    %v83 = vunpack.c.l.b16 %v44
    %v84 = vunpack.c.l.b16 %v45
    %v85 = vunpack.c.l.b16 %v46
    %v86 = vunpack.c.l.b16 %v47
    %v87 = vunpack.c.l.b16 %v48
    %v88 = vunpack.c.l.b16 %v49
    %v89 = vunpack.c.l.b16 %v50
    %v90 = vunpack.c.l.b16 %v51
    %v91 = vunpack.c.l.b16 %v52
    %v92 = vunpack.c.l.b16 %v53
    %v93 = vunpack.c.l.b16 %v54
    %v94 = vunpack.c.l.b16 %v55
    %v95 = vunpack.c.l.b16 %v56
    %v96 = vunpack.c.l.b16 %v57
    %v97 = vpack.c.b16 %v82, %v81
    %v98 = vpack.c.b16 %v84, %v83
    %v99 = vpack.c.b16 %v86, %v85
    %v100 = vpack.c.b16 %v88, %v87
    %v101 = vpack.c.b16 %v90, %v89
    %v102 = vpack.c.b16 %v92, %v91
    %v103 = vpack.c.b16 %v94, %v93
    %v104 = vpack.c.b16 %v96, %v95
    %113 = vmatprep.subr.bf16.mxu0 0
    %114 = vmatpush1.bf16.msra.mxu0 %v97
    %115 = vmatprep.subr.bf16.mxu0 0
    %116 = vmatpush1.bf16.msra.mxu0 %v98
    %117 = vmatprep.subr.bf16.mxu0 0
    %118 = vmatpush1.bf16.msra.mxu0 %v99
    %119 = vmatprep.subr.bf16.mxu0 0
    %120 = vmatpush1.bf16.msra.mxu0 %v100
    %121 = vmatprep.subr.bf16.mxu0 0
    %122 = vmatpush1.bf16.msra.mxu0 %v101
    %123 = vmatprep.subr.bf16.mxu0 0
    %124 = vmatpush1.bf16.msra.mxu0 %v102
    %125 = vmatprep.subr.bf16.mxu0 0
    %126 = vmatpush1.bf16.msra.mxu0 %v103
    %127 = vmatprep.subr.bf16.mxu0 0
    %128 = vmatpush1.bf16.msra.mxu0 %v104
    %129 = vmatprep.subr.bf16.mxu0 0
    %130 = vmatpush1.bf16.msra.mxu0 0
    %131 = vmatprep.subr.bf16.mxu0 0
    %132 = vmatpush1.bf16.msra.mxu0 0
    %133 = vmatprep.subr.bf16.mxu0 0
    %134 = vmatpush1.bf16.msra.mxu0 0
    %135 = vmatprep.subr.bf16.mxu0 0
    %136 = vmatpush1.bf16.msra.mxu0 0
    %137 = vmatprep.subr.bf16.mxu0 0
    %138 = vmatpush1.bf16.msra.mxu0 0
    %139 = vmatprep.subr.bf16.mxu0 0
    %140 = vmatpush1.bf16.msra.mxu0 0
    %141 = vmatprep.subr.bf16.mxu0 0
    %142 = vmatpush1.bf16.msra.mxu0 0
    %143 = vmatprep.subr.bf16.mxu0 0
    %144 = vmatpush1.bf16.msra.mxu0 0
    %145 = vmatprep.mubr.bf16.mxu0 0
    %146 = vmatmul.mubr.bf16.gmra.mrb[0].mxu0 %v41
    %v147 = vpop.f32.mrb[0].mxu0
    %v148 = vadd.f32 %v63, %v147
    %v149 = vpop.f32.mrb[0].mxu0
    %v150 = vpop.f32.mrb[0].mxu0
    %v151 = vpop.f32.mrb[0].mxu0
    %152 = vdwg.mxu0
    %153 = vst [vmem:[#allocation2] sm:$0xff] %v148
    // Predicated region
    $region22: #{mlp_forward.3} parent=1 // pred_check
      _
    $region23: #{mlp_forward.3} parent=1 // pred_check_branch
      %155 = sbr.rel (0) target = $region25
    $region24: #{mlp_forward.3} parent=1 // pred_region
      %s157 = ssub.s32 128, 128
      %158 = vsyncadd [#allocation3], %s157
      %s160 = sshll.u32 [#allocation2], 4
      %s161 = int_to_ptr.vmem [resolvable:$true] %s160
      %163 = dma.vmem_to_hbm [thread:$0]  %s161, 128, %s5, [#allocation3]
    $region25: #{mlp_forward.3} parent=1 // pred_fallthru
      _
    // Predicated region
    $region26: #{mlp_forward.3} parent=1 // pred_check
      _
    $region27: #{mlp_forward.3} parent=1 // pred_check_branch
      %165 = sbr.rel (0) target = $region29
    $region28: #{mlp_forward.3} parent=1 // pred_region
      %166 = dma.done [#allocation3], 128
    $region29: #{mlp_forward.3} parent=1 // pred_fallthru
      _
    %167 = vsyncpa [#allocation3], 1

// kernel: mlp_forward.2
$region0: #{mlp_forward.2}
  #allocation0 [shape = 'u32[]', space=smem, size = 0x4, offset = 0x4, fixed_abs, tag = 'smem constant byte address 0x4 - core index']
  #allocation1 [shape = 'u32[144,128]{1,0:T(1,128)}', space=vmem, size = 0x12000, scoped, tag = 'internal scratch']
  %s0 = inlined_call_operand.vmem [shape: bf16[8,128], index: 0, kind: input, shape index: {}]
  %s1 = inlined_call_operand.vmem [shape: bf16[128,128], index: 1, kind: input, shape index: {}]
  %s2 = inlined_call_operand.vmem [shape: bf16[8,128], index: 2, kind: output, shape index: {0}]
  %s3 = inlined_call_operand.vmem [shape: f32[1,1,128], index: 3, kind: output, shape index: {1}]
  %s4 = inlined_call_operand.vmem [shape: f32[1,1,128], index: 4, kind: output, shape index: {2}]
  %5 = xla_tuple %s2, %s3, %s4
  %s6 = sld [smem:[#allocation0]]
  $region34: #{mlp_forward.2} parent=0
    _
  %s8 = ssub.s32 1, %s6
  %s9 = scalar_select 0, %s8, %s6
  // Predicated region
  $region2: #{mlp_forward.2} parent=0 // pred_check
    _
  $region3: #{mlp_forward.2} parent=0 // pred_check_branch
    %11 = sbr.rel (0) target = $region5
  $region4: #{mlp_forward.2} parent=0 // pred_region
    _
  $region5: #{mlp_forward.2} parent=0 // pred_fallthru
    _
  // Predicated region
  $region6: #{mlp_forward.2} parent=0 // pred_check
    _
  $region7: #{mlp_forward.2} parent=0 // pred_check_branch
    %13 = sbr.rel (0) target = $region9
  $region8: #{mlp_forward.2} parent=0 // pred_region
    _
  $region9: #{mlp_forward.2} parent=0 // pred_fallthru
    _
  %v15 = vld [vmem:[%s0] sm:$0xf]
  %v16 = vld [vmem:[%s1] sm:$0xf]
  %v17 = vld [vmem:[%s1 + $0x4] sm:$0xf]
  %v18 = vld [vmem:[%s1 + $0x8] sm:$0xf]
  %v19 = vld [vmem:[%s1 + $0xc] sm:$0xf]
  %v20 = vld [vmem:[%s1 + $0x10] sm:$0xf]
  %v21 = vld [vmem:[%s1 + $0x14] sm:$0xf]
  %v22 = vld [vmem:[%s1 + $0x18] sm:$0xf]
  %v23 = vld [vmem:[%s1 + $0x1c] sm:$0xf]
  %v24 = vld [vmem:[%s1 + $0x20] sm:$0xf]
  %v25 = vld [vmem:[%s1 + $0x24] sm:$0xf]
  %v26 = vld [vmem:[%s1 + $0x28] sm:$0xf]
  %v27 = vld [vmem:[%s1 + $0x2c] sm:$0xf]
  %v28 = vld [vmem:[%s1 + $0x30] sm:$0xf]
  %v29 = vld [vmem:[%s1 + $0x34] sm:$0xf]
  %v30 = vld [vmem:[%s1 + $0x38] sm:$0xf]
  %v31 = vld [vmem:[%s1 + $0x3c] sm:$0xf]
  %v48 = vunpack.c.l.b16 %v16
  %v49 = vunpack.c.l.b16 %v17
  %v50 = vunpack.c.l.b16 %v18
  %v51 = vunpack.c.l.b16 %v19
  %v52 = vunpack.c.l.b16 %v20
  %v53 = vunpack.c.l.b16 %v21
  %v54 = vunpack.c.l.b16 %v22
  %v55 = vunpack.c.l.b16 %v23
  %v56 = vunpack.c.l.b16 %v24
  %v57 = vunpack.c.l.b16 %v25
  %v58 = vunpack.c.l.b16 %v26
  %v59 = vunpack.c.l.b16 %v27
  %v60 = vunpack.c.l.b16 %v28
  %v61 = vunpack.c.l.b16 %v29
  %v62 = vunpack.c.l.b16 %v30
  %v63 = vunpack.c.l.b16 %v31
  %v64 = vpack.c.b16 %v49, %v48
  %v65 = vpack.c.b16 %v51, %v50
  %v66 = vpack.c.b16 %v53, %v52
  %v67 = vpack.c.b16 %v55, %v54
  %v68 = vpack.c.b16 %v57, %v56
  %v69 = vpack.c.b16 %v59, %v58
  %v70 = vpack.c.b16 %v61, %v60
  %v71 = vpack.c.b16 %v63, %v62
  %80 = vmatprep.subr.bf16.mxu0 0
  %81 = vmatpush1.bf16.msra.mxu0 %v64
  %82 = vmatprep.subr.bf16.mxu0 0
  %83 = vmatpush1.bf16.msra.mxu0 %v65
  %84 = vmatprep.subr.bf16.mxu0 0
  %85 = vmatpush1.bf16.msra.mxu0 %v66
  %86 = vmatprep.subr.bf16.mxu0 0
  %87 = vmatpush1.bf16.msra.mxu0 %v67
  %88 = vmatprep.subr.bf16.mxu0 0
  %89 = vmatpush1.bf16.msra.mxu0 %v68
  %90 = vmatprep.subr.bf16.mxu0 0
  %91 = vmatpush1.bf16.msra.mxu0 %v69
  %92 = vmatprep.subr.bf16.mxu0 0
  %93 = vmatpush1.bf16.msra.mxu0 %v70
  %94 = vmatprep.subr.bf16.mxu0 0
  %95 = vmatpush1.bf16.msra.mxu0 %v71
  %96 = vmatprep.subr.bf16.mxu0 0
  %97 = vmatpush1.bf16.msra.mxu0 0
  %98 = vmatprep.subr.bf16.mxu0 0
  %99 = vmatpush1.bf16.msra.mxu0 0
  %100 = vmatprep.subr.bf16.mxu0 0
  %101 = vmatpush1.bf16.msra.mxu0 0
  %102 = vmatprep.subr.bf16.mxu0 0
  %103 = vmatpush1.bf16.msra.mxu0 0
  %104 = vmatprep.subr.bf16.mxu0 0
  %105 = vmatpush1.bf16.msra.mxu0 0
  %106 = vmatprep.subr.bf16.mxu0 0
  %107 = vmatpush1.bf16.msra.mxu0 0
  %108 = vmatprep.subr.bf16.mxu0 0
  %109 = vmatpush1.bf16.msra.mxu0 0
  %110 = vmatprep.subr.bf16.mxu0 0
  %111 = vmatpush1.bf16.msra.mxu0 0
  %112 = vmatprep.mubr.bf16.mxu0 0
  %113 = vmatmul.mubr.bf16.gmra.mrb[0].mxu0 %v15
  %v114 = vpop.f32.mrb[0].mxu0
  %v115 = vadd.f32 0.0, %v114
  %v116 = vpop.f32.mrb[0].mxu0
  %v117 = vpop.f32.mrb[0].mxu0
  %v118 = vpop.f32.mrb[0].mxu0
  %119 = vdwg.mxu0
  %v120 = vrot.slane %v115, 4
  %v121 = vadd.f32 %v115, %v120
  %v122 = vrot.slane %v121, 2
  %v123 = vadd.f32 %v121, %v122
  %v124 = vrot.slane %v123, 1
  %v125 = vadd.f32 %v123, %v124
  %126 = vst [vmem:[%s3] sm:$0x1] %v125
  %v127 = vmul.f32 %v115, %v115
  %v128 = vrot.slane %v127, 4
  %v129 = vadd.f32 %v127, %v128
  %v130 = vrot.slane %v129, 2
  %v131 = vadd.f32 %v129, %v130
  %v132 = vrot.slane %v131, 1
  %v133 = vadd.f32 %v131, %v132
  %134 = vst [vmem:[%s4] sm:$0x1] %v133
  %v135 = vpack.c.bf16 %v115, %v115
  %136 = vst [vmem:[%s2] sm:$0xf] %v135
  // Predicated region
  $region10: #{mlp_forward.2} parent=0 // pred_check
    _
  $region11: #{mlp_forward.2} parent=0 // pred_check_branch
    %138 = sbr.rel (0) target = $region13
  $region12: #{mlp_forward.2} parent=0 // pred_region
    _
  $region13: #{mlp_forward.2} parent=0 // pred_fallthru
    _
  // Predicated region
  $region14: #{mlp_forward.2} parent=0 // pred_check
    _
  $region15: #{mlp_forward.2} parent=0 // pred_check_branch
    %140 = sbr.rel (0) target = $region17
  $region16: #{mlp_forward.2} parent=0 // pred_region
    _
  $region17: #{mlp_forward.2} parent=0 // pred_fallthru
    _
  // Predicated region
  $region18: #{mlp_forward.2} parent=0 // pred_check
    _
  $region19: #{mlp_forward.2} parent=0 // pred_check_branch
    %142 = sbr.rel (0) target = $region21
  $region20: #{mlp_forward.2} parent=0 // pred_region
    _
  $region21: #{mlp_forward.2} parent=0 // pred_fallthru
    _
  // Predicated region
  $region22: #{mlp_forward.2} parent=0 // pred_check
    _
  $region23: #{mlp_forward.2} parent=0 // pred_check_branch
    %144 = sbr.rel (0) target = $region25
  $region24: #{mlp_forward.2} parent=0 // pred_region
    _
  $region25: #{mlp_forward.2} parent=0 // pred_fallthru
    _
  // Predicated region
  $region26: #{mlp_forward.2} parent=0 // pred_check
    _
  $region27: #{mlp_forward.2} parent=0 // pred_check_branch
    %146 = sbr.rel (0) target = $region29
  $region28: #{mlp_forward.2} parent=0 // pred_region
    _
  $region29: #{mlp_forward.2} parent=0 // pred_fallthru
    _
  // Predicated region
  $region30: #{mlp_forward.2} parent=0 // pred_check
    _
  $region31: #{mlp_forward.2} parent=0 // pred_check_branch
    %148 = sbr.rel (0) target = $region33
  $region32: #{mlp_forward.2} parent=0 // pred_region
    _
  $region33: #{mlp_forward.2} parent=0 // pred_fallthru
    _

// kernel: mlp_forward.3
$region0: #{mlp_forward.3}
  #allocation0 [shape = 'u32[]', space=smem, size = 0x4, offset = 0x4, fixed_abs, tag = 'smem constant byte address 0x4 - core index']
  #allocation1 [shape = 'u32[144,128]{1,0:T(1,128)}', space=vmem, size = 0x12000, scoped, tag = 'internal scratch']
  %s0 = inlined_call_operand.vmem [shape: bf16[8,128], index: 0, kind: input, shape index: {}]
  %s1 = inlined_call_operand.vmem [shape: f32[1,128], index: 1, kind: input, shape index: {}]
  %s2 = inlined_call_operand.vmem [shape: f32[1,128], index: 2, kind: input, shape index: {}]
  %s3 = inlined_call_operand.vmem [shape: bf16[128,128], index: 3, kind: input, shape index: {}]
  %s4 = inlined_call_operand.vmem [shape: f32[1,128], index: 4, kind: input, shape index: {}]
  %s5 = inlined_call_operand.hbm [shape: f32[8,128], index: 5, kind: output, shape index: {}]
  %s6 = sld [smem:[#allocation0]]
  $region30: #{mlp_forward.3} parent=0
    _
  %s8 = ssub.s32 1, %s6
  %s9 = scalar_select 0, %s8, %s6
  $region1: #{mlp_forward.3} parent=0
    #allocation2 [shape = 'u8[4096]{0}', space=vmem, size = 0x1000, scoped, tag = 'output window, operand 0, single buffered']
    #allocation3 [shape = 's32[1]{0}', space=sflag, size = 0x4, scoped, tag = 'scoped memory for mlp_forward.3']
    %10 = vsyncpa [#allocation3], 0
    // Predicated region
    $region2: #{mlp_forward.3} parent=1 // pred_check
      _
    $region3: #{mlp_forward.3} parent=1 // pred_check_branch
      %12 = sbr.rel (0) target = $region5
    $region4: #{mlp_forward.3} parent=1 // pred_region
      _
    $region5: #{mlp_forward.3} parent=1 // pred_fallthru
      _
    // Predicated region
    $region6: #{mlp_forward.3} parent=1 // pred_check
      _
    $region7: #{mlp_forward.3} parent=1 // pred_check_branch
      %14 = sbr.rel (0) target = $region9
    $region8: #{mlp_forward.3} parent=1 // pred_region
      _
    $region9: #{mlp_forward.3} parent=1 // pred_fallthru
      _
    // Predicated region
    $region10: #{mlp_forward.3} parent=1 // pred_check
      _
    $region11: #{mlp_forward.3} parent=1 // pred_check_branch
      %16 = sbr.rel (0) target = $region13
    $region12: #{mlp_forward.3} parent=1 // pred_region
      _
    $region13: #{mlp_forward.3} parent=1 // pred_fallthru
      _
    // Predicated region
    $region14: #{mlp_forward.3} parent=1 // pred_check
      _
    $region15: #{mlp_forward.3} parent=1 // pred_check_branch
      %18 = sbr.rel (0) target = $region17
    $region16: #{mlp_forward.3} parent=1 // pred_region
      _
    $region17: #{mlp_forward.3} parent=1 // pred_fallthru
      _
    // Predicated region
    $region18: #{mlp_forward.3} parent=1 // pred_check
      _
    $region19: #{mlp_forward.3} parent=1 // pred_check_branch
      %20 = sbr.rel (0) target = $region21
    $region20: #{mlp_forward.3} parent=1 // pred_region
      _
    $region21: #{mlp_forward.3} parent=1 // pred_fallthru
      _
    %v22 = vld [vmem:[%s0] sm:$0xf]
    %v23 = vld [vmem:[%s1] sm:$0x1]
    %v24 = vunpack.c.l.bf16 %v22
    %v26 = vlaneseq
    %v27 = vshrl.u32 %v26, 7
    %v28 = vsub.s32 0, %v27
    %v29 = vrot.slane %v23, %v28
    %v31 = vmul.f32 %v24, %v29
    %v32 = vld [vmem:[%s2] sm:$0x1]
    %v34 = vlaneseq
    %v35 = vshrl.u32 %v34, 7
    %v36 = vsub.s32 0, %v35
    %v37 = vrot.slane %v32, %v36
    %v39 = vadd.f32 %v31, %v37
    %v40 = vmax.f32 %v39, 0.0
    %v41 = vpack.c.bf16 %v40, %v40
    %v42 = vld [vmem:[%s3] sm:$0xf]
    %v43 = vld [vmem:[%s3 + $0x4] sm:$0xf]
    %v44 = vld [vmem:[%s3 + $0x8] sm:$0xf]
    %v45 = vld [vmem:[%s3 + $0xc] sm:$0xf]
    %v46 = vld [vmem:[%s3 + $0x10] sm:$0xf]
    %v47 = vld [vmem:[%s3 + $0x14] sm:$0xf]
    %v48 = vld [vmem:[%s3 + $0x18] sm:$0xf]
    %v49 = vld [vmem:[%s3 + $0x1c] sm:$0xf]
    %v50 = vld [vmem:[%s3 + $0x20] sm:$0xf]
    %v51 = vld [vmem:[%s3 + $0x24] sm:$0xf]
    %v52 = vld [vmem:[%s3 + $0x28] sm:$0xf]
    %v53 = vld [vmem:[%s3 + $0x2c] sm:$0xf]
    %v54 = vld [vmem:[%s3 + $0x30] sm:$0xf]
    %v55 = vld [vmem:[%s3 + $0x34] sm:$0xf]
    %v56 = vld [vmem:[%s3 + $0x38] sm:$0xf]
    %v57 = vld [vmem:[%s3 + $0x3c] sm:$0xf]
    %v58 = vld [vmem:[%s4] sm:$0x1]
    %v60 = vlaneseq
    %v61 = vshrl.u32 %v60, 7
    %v62 = vsub.s32 0, %v61
    %v63 = vrot.slane %v58, %v62
    %v81 = vunpack.c.l.b16 %v42
    %v82 = vunpack.c.l.b16 %v43
    %v83 = vunpack.c.l.b16 %v44
    %v84 = vunpack.c.l.b16 %v45
    %v85 = vunpack.c.l.b16 %v46
    %v86 = vunpack.c.l.b16 %v47
    %v87 = vunpack.c.l.b16 %v48
    %v88 = vunpack.c.l.b16 %v49
    %v89 = vunpack.c.l.b16 %v50
    %v90 = vunpack.c.l.b16 %v51
    %v91 = vunpack.c.l.b16 %v52
    %v92 = vunpack.c.l.b16 %v53
    %v93 = vunpack.c.l.b16 %v54
    %v94 = vunpack.c.l.b16 %v55
    %v95 = vunpack.c.l.b16 %v56
    %v96 = vunpack.c.l.b16 %v57
    %v97 = vpack.c.b16 %v82, %v81
    %v98 = vpack.c.b16 %v84, %v83
    %v99 = vpack.c.b16 %v86, %v85
    %v100 = vpack.c.b16 %v88, %v87
    %v101 = vpack.c.b16 %v90, %v89
    %v102 = vpack.c.b16 %v92, %v91
    %v103 = vpack.c.b16 %v94, %v93
    %v104 = vpack.c.b16 %v96, %v95
    %113 = vmatprep.subr.bf16.mxu0 0
    %114 = vmatpush1.bf16.msra.mxu0 %v97
    %115 = vmatprep.subr.bf16.mxu0 0
    %116 = vmatpush1.bf16.msra.mxu0 %v98
    %117 = vmatprep.subr.bf16.mxu0 0
    %118 = vmatpush1.bf16.msra.mxu0 %v99
    %119 = vmatprep.subr.bf16.mxu0 0
    %120 = vmatpush1.bf16.msra.mxu0 %v100
    %121 = vmatprep.subr.bf16.mxu0 0
    %122 = vmatpush1.bf16.msra.mxu0 %v101
    %123 = vmatprep.subr.bf16.mxu0 0
    %124 = vmatpush1.bf16.msra.mxu0 %v102
    %125 = vmatprep.subr.bf16.mxu0 0
    %126 = vmatpush1.bf16.msra.mxu0 %v103
    %127 = vmatprep.subr.bf16.mxu0 0
    %128 = vmatpush1.bf16.msra.mxu0 %v104
    %129 = vmatprep.subr.bf16.mxu0 0
    %130 = vmatpush1.bf16.msra.mxu0 0
    %131 = vmatprep.subr.bf16.mxu0 0
    %132 = vmatpush1.bf16.msra.mxu0 0
    %133 = vmatprep.subr.bf16.mxu0 0
    %134 = vmatpush1.bf16.msra.mxu0 0
    %135 = vmatprep.subr.bf16.mxu0 0
    %136 = vmatpush1.bf16.msra.mxu0 0
    %137 = vmatprep.subr.bf16.mxu0 0
    %138 = vmatpush1.bf16.msra.mxu0 0
    %139 = vmatprep.subr.bf16.mxu0 0
    %140 = vmatpush1.bf16.msra.mxu0 0
    %141 = vmatprep.subr.bf16.mxu0 0
    %142 = vmatpush1.bf16.msra.mxu0 0
    %143 = vmatprep.subr.bf16.mxu0 0
    %144 = vmatpush1.bf16.msra.mxu0 0
    %145 = vmatprep.mubr.bf16.mxu0 0
    %146 = vmatmul.mubr.bf16.gmra.mrb[0].mxu0 %v41
    %v147 = vpop.f32.mrb[0].mxu0
    %v148 = vadd.f32 %v63, %v147
    %v149 = vpop.f32.mrb[0].mxu0
    %v150 = vpop.f32.mrb[0].mxu0
    %v151 = vpop.f32.mrb[0].mxu0
    %152 = vdwg.mxu0
    %153 = vst [vmem:[#allocation2] sm:$0xff] %v148
    // Predicated region
    $region22: #{mlp_forward.3} parent=1 // pred_check
      _
    $region23: #{mlp_forward.3} parent=1 // pred_check_branch
      %155 = sbr.rel (0) target = $region25
    $region24: #{mlp_forward.3} parent=1 // pred_region
      %s157 = ssub.s32 128, 128
      %158 = vsyncadd [#allocation3], %s157
      %s160 = sshll.u32 [#allocation2], 4
      %s161 = int_to_ptr.vmem [resolvable:$true] %s160
      %163 = dma.vmem_to_hbm [thread:$0]  %s161, 128, %s5, [#allocation3]
    $region25: #{mlp_forward.3} parent=1 // pred_fallthru
      _
    // Predicated region
    $region26: #{mlp_forward.3} parent=1 // pred_check
      _
    $region27: #{mlp_forward.3} parent=1 // pred_check_branch
      %165 = sbr.rel (0) target = $region29
    $region28: #{mlp_forward.3} parent=1 // pred_region
      %166 = dma.done [#allocation3], 128
    $region29: #{mlp_forward.3} parent=1 // pred_fallthru
      _
    %167 = vsyncpa [#allocation3], 1

</llo_original>
